<compile_context>
chip_gen: v7x
topology: tpu7x:2x2x1
jax: 0.10.0
libtpu: 0.0.40
codegen_flags: <defaults>
</compile_context>

<pallas_src>
import functools

import jax
import jax.numpy as jnp
from jax.experimental import pallas as pl
from jax.experimental.pallas import tpu as pltpu


def spectral_attention_kernel(x_ref, w1b_ref, w2b_ref, o_ref, *, chunk, use_mxu):
    # x_ref:   (TR, W)   flat tile: G batch rows packed per 128-lane row
    # w1b_ref: (GH, W)   block-diagonal fc1 weight (rows lane-aligned), f32
    # w2b_ref: (GH, W)   block-diagonal fc2 weight (transposed), f32
    # o_ref:   (TR, W)   sigmoid(relu(fc1(x)) @ fc2) in the same flat layout
    gh = w1b_ref.shape[0]
    tile_r = x_ref.shape[0]
    n_chunks = tile_r // chunk

    # Hoist the (tiny) weight loads / casts out of the chunk loop.
    if use_mxu:
        w1b = w1b_ref[...].astype(jnp.bfloat16)
        w2b = w2b_ref[...].astype(jnp.bfloat16)
    else:
        w1b = w1b_ref[...].astype(jnp.float32)
        w2b = w2b_ref[...].astype(jnp.float32)

    # Chunked loop bounds vreg live ranges (no full-tile x / y materialization).
    @pl.loop(0, n_chunks)
    def _(c):
        r0 = pl.multiple_of(c * chunk, chunk)
        xc = x_ref[pl.ds(r0, chunk), :]

        if use_mxu:
            # MXU path (v7x / large hidden): bf16 operands, f32 accumulate.
            xb = xc.astype(jnp.bfloat16)
            h = jax.lax.dot_general(
                xb, w1b, (((1,), (1,)), ((), ())),
                preferred_element_type=jnp.float32)                  # (chunk, GH)
            h = jnp.maximum(h, 0.0).astype(jnp.bfloat16)             # relu
            y = jnp.dot(h, w2b, preferred_element_type=jnp.float32)  # (chunk, W)
        else:
            # VPU/XLU path (tiny hidden dim): per fc1 row one broadcast-multiply
            # + lane reduce; fc2 is a broadcast accumulate.  y initialized from
            # the j=0 term (saves the zeros materialization + adds).
            xf = xc.astype(jnp.float32)
            h0 = jnp.maximum(
                jnp.sum(xf * w1b[0:1, :], axis=-1, keepdims=True), 0.0)
            y = h0 * w2b[0:1, :]
            for j in range(1, gh):  # tiny static unroll (gh <= 16 here)
                hj = jnp.maximum(
                    jnp.sum(xf * w1b[j:j + 1, :], axis=-1, keepdims=True), 0.0)
                y = y + hj * w2b[j:j + 1, :]

        # Single-EUP sigmoid: sigmoid(y) = 0.5 * tanh(0.5*y) + 0.5 (exact).
        o_ref[pl.ds(r0, chunk), :] = (0.5 * jnp.tanh(0.5 * y) + 0.5).astype(o_ref.dtype)


def _round_up(a, m):
    return (a + m - 1) // m * m


def _default_use_mxu():
    # Route fc1/fc2 through the MXU on v7x (XLU would otherwise bind at 3.2 TB/s
    # HBM); keep the VPU/XLU path on v5e/v6e where HBM binds first.
    try:
        kind = jax.devices()[0].device_kind.lower()
        return ("v7" in kind) or ("tpu7" in kind)
    except Exception:
        return False


def spectral_attention(x, w1, w2, *, rows_per_step=4096,
                       io_dtype=jnp.bfloat16, use_mxu=None):
    """sigmoid(relu(x @ w1.T) @ w2.T) with PyTorch Linear weight layouts.

    x : (B, C)   input features
    w1: (H, C)   fc1.weight (H = C // ratio), bias=False
    w2: (C, H)   fc2.weight, bias=False

    io_dtype: activation dtype at the HBM boundary (bf16 halves traffic; the
              kernel accumulates in f32 either way).  Use jnp.float32 to keep
              exact-dtype semantics.
    """
    B, C = x.shape
    H, Cw = w1.shape
    assert Cw == C and w2.shape == (C, H)

    # Pack G batch rows per flat row so the kernel's last dim is a multiple of
    # 128 (lane-dense loads and stores).  Row-major reshape => free in XLA.
    if C % 128 == 0:
        G = 1
    elif 128 % C == 0:
        G = 128 // C                 # e.g. C=32 -> G=4, flat width 128
    else:
        G = 1                        # TODO(synk): pad C to a multiple of 128 for lane-dense stores
    W = G * C
    GH = G * H

    if use_mxu is None:
        use_mxu = _default_use_mxu() or GH > 16

    # Block-diagonal weights in the flat layout (built once in XLA, tiny).
    eye = jnp.eye(G, dtype=jnp.float32)
    w1b = jnp.kron(eye, w1.astype(jnp.float32))   # (GH, W)
    w2b = jnp.kron(eye, w2.T.astype(jnp.float32))  # (GH, W)

    io_dtype = jnp.dtype(io_dtype)
    x = x.astype(io_dtype)

    # --- tile-size selection ---------------------------------------------
    sub = 16                # sublane multiple that covers bf16 packing
    chunk_rows = 128        # inner-loop chunk (bounds vreg live ranges)
    # Keep double-buffered in+out tiles well under v5e's 16 MiB scoped VMEM.
    per_row_bytes = 2 * 2 * W * io_dtype.itemsize
    max_rows = max(chunk_rows,
                   ((12 << 20) // per_row_bytes) // chunk_rows * chunk_rows)

    R = pl.cdiv(B, G)                                   # flat rows needed
    # >=2 grid steps when the batch allows it (v7x has 2 TensorCores).
    tile_r = min(rows_per_step, _round_up(pl.cdiv(R, 2), sub), max_rows)
    tile_r = _round_up(tile_r, sub)
    if tile_r > chunk_rows:
        tile_r = min(_round_up(tile_r, chunk_rows), max_rows)
        chunk = chunk_rows
    else:
        chunk = tile_r

    R_pad = _round_up(R, tile_r)
    B_pad = R_pad * G
    if B_pad != B:
        x = jnp.pad(x, ((0, B_pad - B), (0, 0)))        # ragged batch -> pad, slice off later
    x_flat = x.reshape(R_pad, W)                        # free row-major reshape

    kernel = functools.partial(spectral_attention_kernel,
                               chunk=chunk, use_mxu=use_mxu)

    out_flat = pl.pallas_call(
        kernel,
        out_shape=jax.ShapeDtypeStruct((R_pad, W), io_dtype),
        grid_spec=pltpu.PrefetchScalarGridSpec(
            num_scalar_prefetch=0,
            grid=(R_pad // tile_r,),
            in_specs=[
                pl.BlockSpec((tile_r, W), lambda i: (i, 0)),   # x tile per step
                pl.BlockSpec((GH, W), lambda i: (0, 0)),       # resident w1b (tiny)
                pl.BlockSpec((GH, W), lambda i: (0, 0)),       # resident w2b (tiny)
            ],
            out_specs=pl.BlockSpec((tile_r, W), lambda i: (i, 0)),
        ),
        compiler_params=pltpu.CompilerParams(
            # Steps are independent -> shardable across v7x's two TensorCores.
            dimension_semantics=("parallel",),
        ),
    )(x_flat, w1b, w2b)

    return out_flat.reshape(B_pad, C)[:B]


if __name__ == "__main__":
    # Hyperparameters consistent with SpectralAttention(in_planes=32, ratio=16)
    in_planes = 32
    ratio = 16
    hidden = in_planes // ratio      # 2
    batch = 16

    key = jax.random.PRNGKey(0)
    kx, k1, k2, kx2 = jax.random.split(key, 4)

    # nn.Linear default init (uniform +/- 1/sqrt(fan_in)); bias=False in the module.
    bound1 = 1.0 / (in_planes ** 0.5)
    bound2 = 1.0 / (hidden ** 0.5)
    w1 = jax.random.uniform(k1, (hidden, in_planes), jnp.float32, -bound1, bound1)  # fc1.weight
    w2 = jax.random.uniform(k2, (in_planes, hidden), jnp.float32, -bound2, bound2)  # fc2.weight

    def ref_fn(xv):
        return jax.nn.sigmoid(jnp.maximum(xv @ w1.T, 0.0) @ w2.T)

    # Small shape (production-like): single grid step, single chunk.
    x = jax.random.normal(kx, (batch, in_planes), jnp.float32)
    out = jax.block_until_ready(spectral_attention(x, w1, w2))
    assert out.shape == (batch, in_planes)
    # bf16 activation I/O -> a few e-3 abs error vs. the f32 reference.
    assert jnp.allclose(out.astype(jnp.float32), ref_fn(x), atol=2e-2, rtol=2e-2), \
        "mismatch vs reference (small batch)"

    # Larger batch: exercises the multi-step grid and the chunked inner loop.
    batch2 = 1536
    x2 = jax.random.normal(kx2, (batch2, in_planes), jnp.float32)
    out2 = jax.block_until_ready(spectral_attention(x2, w1, w2))
    assert out2.shape == (batch2, in_planes)
    assert jnp.allclose(out2.astype(jnp.float32), ref_fn(x2), atol=2e-2, rtol=2e-2), \
        "mismatch vs reference (large batch)"

    print("KERNEL_OK")
</pallas_src>

<mosaic_0001>
module attributes {stable_mosaic.version = 11 : i64} {
  func.func @spectral_attention_kernel(%arg0: i32, %arg1: memref<16x128xbf16, #tpu.memory_space<vmem>>, %arg2: memref<8x128xf32, #tpu.memory_space<vmem>>, %arg3: memref<8x128xf32, #tpu.memory_space<vmem>>, %arg4: memref<16x128xbf16, #tpu.memory_space<vmem>>) attributes {dimension_semantics = [#tpu.dimension_semantics<parallel>], iteration_bounds = array<i64: 1>, scalar_prefetch = 0 : i64, scratch_operands = 0 : i64, tpu.core_type = #tpu.core_type<tc>, window_params = [{transform_indices = @transform_0, window_bounds = array<i64: 16, 128>}, {pipeline_mode = #tpu.pipeline_mode<synchronous>, transform_indices = @transform_1, window_bounds = array<i64: 8, 128>}, {pipeline_mode = #tpu.pipeline_mode<synchronous>, transform_indices = @transform_2, window_bounds = array<i64: 8, 128>}, {transform_indices = @transform_3, window_bounds = array<i64: 16, 128>}]} {
    %c0 = arith.constant 0 : index
    %c0_0 = arith.constant 0 : index
    %0 = vector.load %arg2[%c0, %c0_0] : memref<8x128xf32, #tpu.memory_space<vmem>>, vector<8x128xf32>
    %c0_1 = arith.constant 0 : index
    %c0_2 = arith.constant 0 : index
    %1 = vector.load %arg3[%c0_1, %c0_2] : memref<8x128xf32, #tpu.memory_space<vmem>>, vector<8x128xf32>
    %c0_i32 = arith.constant 0 : i32
    %c1_i32 = arith.constant 1 : i32
    %2 = arith.muli %c0_i32, %c1_i32 : i32
    %c0_i32_3 = arith.constant 0 : i32
    %3 = arith.addi %c0_i32_3, %2 : i32
    %c16_i32 = arith.constant 16 : i32
    %4 = arith.muli %3, %c16_i32 : i32
    %5 = tpu.assume_multiple %4, 16 : i32
    %6 = arith.index_cast %5 : i32 to index
    %c0_4 = arith.constant 0 : index
    %7 = vector.load %arg1[%6, %c0_4] : memref<16x128xbf16, #tpu.memory_space<vmem>>, vector<16x128xbf16>
    %8 = arith.extf %7 : vector<16x128xbf16> to vector<16x128xf32>
    %9 = vector.extract_strided_slice %0 {offsets = [0, 0], sizes = [1, 128], strides = [1, 1]} : vector<8x128xf32> to vector<1x128xf32>
    %10 = vector.broadcast %9 : vector<1x128xf32> to vector<16x128xf32>
    %11 = arith.mulf %8, %10 : vector<16x128xf32>
    %cst = arith.constant dense<0.000000e+00> : vector<16xf32>
    %12 = vector.multi_reduction <add>, %11, %cst [1] : vector<16x128xf32> to vector<16xf32>
    %13 = vector.shape_cast %12 : vector<16xf32> to vector<16x1xf32>
    %cst_5 = arith.constant 0.000000e+00 : f32
    %14 = vector.broadcast %cst_5 : f32 to vector<16x1xf32>
    %15 = arith.maximumf %13, %14 : vector<16x1xf32>
    %16 = vector.extract_strided_slice %1 {offsets = [0, 0], sizes = [1, 128], strides = [1, 1]} : vector<8x128xf32> to vector<1x128xf32>
    %17 = vector.broadcast %15 : vector<16x1xf32> to vector<16x128xf32>
    %18 = vector.broadcast %16 : vector<1x128xf32> to vector<16x128xf32>
    %19 = arith.mulf %17, %18 : vector<16x128xf32>
    %20 = vector.extract_strided_slice %0 {offsets = [1, 0], sizes = [1, 128], strides = [1, 1]} : vector<8x128xf32> to vector<1x128xf32>
    %21 = vector.broadcast %20 : vector<1x128xf32> to vector<16x128xf32>
    %22 = arith.mulf %8, %21 : vector<16x128xf32>
    %cst_6 = arith.constant dense<0.000000e+00> : vector<16xf32>
    %23 = vector.multi_reduction <add>, %22, %cst_6 [1] : vector<16x128xf32> to vector<16xf32>
    %24 = vector.shape_cast %23 : vector<16xf32> to vector<16x1xf32>
    %cst_7 = arith.constant 0.000000e+00 : f32
    %25 = vector.broadcast %cst_7 : f32 to vector<16x1xf32>
    %26 = arith.maximumf %24, %25 : vector<16x1xf32>
    %27 = vector.extract_strided_slice %1 {offsets = [1, 0], sizes = [1, 128], strides = [1, 1]} : vector<8x128xf32> to vector<1x128xf32>
    %28 = vector.broadcast %26 : vector<16x1xf32> to vector<16x128xf32>
    %29 = vector.broadcast %27 : vector<1x128xf32> to vector<16x128xf32>
    %30 = arith.mulf %28, %29 : vector<16x128xf32>
    %31 = arith.addf %19, %30 : vector<16x128xf32>
    %32 = vector.extract_strided_slice %0 {offsets = [2, 0], sizes = [1, 128], strides = [1, 1]} : vector<8x128xf32> to vector<1x128xf32>
    %33 = vector.broadcast %32 : vector<1x128xf32> to vector<16x128xf32>
    %34 = arith.mulf %8, %33 : vector<16x128xf32>
    %cst_8 = arith.constant dense<0.000000e+00> : vector<16xf32>
    %35 = vector.multi_reduction <add>, %34, %cst_8 [1] : vector<16x128xf32> to vector<16xf32>
    %36 = vector.shape_cast %35 : vector<16xf32> to vector<16x1xf32>
    %cst_9 = arith.constant 0.000000e+00 : f32
    %37 = vector.broadcast %cst_9 : f32 to vector<16x1xf32>
    %38 = arith.maximumf %36, %37 : vector<16x1xf32>
    %39 = vector.extract_strided_slice %1 {offsets = [2, 0], sizes = [1, 128], strides = [1, 1]} : vector<8x128xf32> to vector<1x128xf32>
    %40 = vector.broadcast %38 : vector<16x1xf32> to vector<16x128xf32>
    %41 = vector.broadcast %39 : vector<1x128xf32> to vector<16x128xf32>
    %42 = arith.mulf %40, %41 : vector<16x128xf32>
    %43 = arith.addf %31, %42 : vector<16x128xf32>
    %44 = vector.extract_strided_slice %0 {offsets = [3, 0], sizes = [1, 128], strides = [1, 1]} : vector<8x128xf32> to vector<1x128xf32>
    %45 = vector.broadcast %44 : vector<1x128xf32> to vector<16x128xf32>
    %46 = arith.mulf %8, %45 : vector<16x128xf32>
    %cst_10 = arith.constant dense<0.000000e+00> : vector<16xf32>
    %47 = vector.multi_reduction <add>, %46, %cst_10 [1] : vector<16x128xf32> to vector<16xf32>
    %48 = vector.shape_cast %47 : vector<16xf32> to vector<16x1xf32>
    %cst_11 = arith.constant 0.000000e+00 : f32
    %49 = vector.broadcast %cst_11 : f32 to vector<16x1xf32>
    %50 = arith.maximumf %48, %49 : vector<16x1xf32>
    %51 = vector.extract_strided_slice %1 {offsets = [3, 0], sizes = [1, 128], strides = [1, 1]} : vector<8x128xf32> to vector<1x128xf32>
    %52 = vector.broadcast %50 : vector<16x1xf32> to vector<16x128xf32>
    %53 = vector.broadcast %51 : vector<1x128xf32> to vector<16x128xf32>
    %54 = arith.mulf %52, %53 : vector<16x128xf32>
    %55 = arith.addf %43, %54 : vector<16x128xf32>
    %56 = vector.extract_strided_slice %0 {offsets = [4, 0], sizes = [1, 128], strides = [1, 1]} : vector<8x128xf32> to vector<1x128xf32>
    %57 = vector.broadcast %56 : vector<1x128xf32> to vector<16x128xf32>
    %58 = arith.mulf %8, %57 : vector<16x128xf32>
    %cst_12 = arith.constant dense<0.000000e+00> : vector<16xf32>
    %59 = vector.multi_reduction <add>, %58, %cst_12 [1] : vector<16x128xf32> to vector<16xf32>
    %60 = vector.shape_cast %59 : vector<16xf32> to vector<16x1xf32>
    %cst_13 = arith.constant 0.000000e+00 : f32
    %61 = vector.broadcast %cst_13 : f32 to vector<16x1xf32>
    %62 = arith.maximumf %60, %61 : vector<16x1xf32>
    %63 = vector.extract_strided_slice %1 {offsets = [4, 0], sizes = [1, 128], strides = [1, 1]} : vector<8x128xf32> to vector<1x128xf32>
    %64 = vector.broadcast %62 : vector<16x1xf32> to vector<16x128xf32>
    %65 = vector.broadcast %63 : vector<1x128xf32> to vector<16x128xf32>
    %66 = arith.mulf %64, %65 : vector<16x128xf32>
    %67 = arith.addf %55, %66 : vector<16x128xf32>
    %68 = vector.extract_strided_slice %0 {offsets = [5, 0], sizes = [1, 128], strides = [1, 1]} : vector<8x128xf32> to vector<1x128xf32>
    %69 = vector.broadcast %68 : vector<1x128xf32> to vector<16x128xf32>
    %70 = arith.mulf %8, %69 : vector<16x128xf32>
    %cst_14 = arith.constant dense<0.000000e+00> : vector<16xf32>
    %71 = vector.multi_reduction <add>, %70, %cst_14 [1] : vector<16x128xf32> to vector<16xf32>
    %72 = vector.shape_cast %71 : vector<16xf32> to vector<16x1xf32>
    %cst_15 = arith.constant 0.000000e+00 : f32
    %73 = vector.broadcast %cst_15 : f32 to vector<16x1xf32>
    %74 = arith.maximumf %72, %73 : vector<16x1xf32>
    %75 = vector.extract_strided_slice %1 {offsets = [5, 0], sizes = [1, 128], strides = [1, 1]} : vector<8x128xf32> to vector<1x128xf32>
    %76 = vector.broadcast %74 : vector<16x1xf32> to vector<16x128xf32>
    %77 = vector.broadcast %75 : vector<1x128xf32> to vector<16x128xf32>
    %78 = arith.mulf %76, %77 : vector<16x128xf32>
    %79 = arith.addf %67, %78 : vector<16x128xf32>
    %80 = vector.extract_strided_slice %0 {offsets = [6, 0], sizes = [1, 128], strides = [1, 1]} : vector<8x128xf32> to vector<1x128xf32>
    %81 = vector.broadcast %80 : vector<1x128xf32> to vector<16x128xf32>
    %82 = arith.mulf %8, %81 : vector<16x128xf32>
    %cst_16 = arith.constant dense<0.000000e+00> : vector<16xf32>
    %83 = vector.multi_reduction <add>, %82, %cst_16 [1] : vector<16x128xf32> to vector<16xf32>
    %84 = vector.shape_cast %83 : vector<16xf32> to vector<16x1xf32>
    %cst_17 = arith.constant 0.000000e+00 : f32
    %85 = vector.broadcast %cst_17 : f32 to vector<16x1xf32>
    %86 = arith.maximumf %84, %85 : vector<16x1xf32>
    %87 = vector.extract_strided_slice %1 {offsets = [6, 0], sizes = [1, 128], strides = [1, 1]} : vector<8x128xf32> to vector<1x128xf32>
    %88 = vector.broadcast %86 : vector<16x1xf32> to vector<16x128xf32>
    %89 = vector.broadcast %87 : vector<1x128xf32> to vector<16x128xf32>
    %90 = arith.mulf %88, %89 : vector<16x128xf32>
    %91 = arith.addf %79, %90 : vector<16x128xf32>
    %92 = vector.extract_strided_slice %0 {offsets = [7, 0], sizes = [1, 128], strides = [1, 1]} : vector<8x128xf32> to vector<1x128xf32>
    %93 = vector.broadcast %92 : vector<1x128xf32> to vector<16x128xf32>
    %94 = arith.mulf %8, %93 : vector<16x128xf32>
    %cst_18 = arith.constant dense<0.000000e+00> : vector<16xf32>
    %95 = vector.multi_reduction <add>, %94, %cst_18 [1] : vector<16x128xf32> to vector<16xf32>
    %96 = vector.shape_cast %95 : vector<16xf32> to vector<16x1xf32>
    %cst_19 = arith.constant 0.000000e+00 : f32
    %97 = vector.broadcast %cst_19 : f32 to vector<16x1xf32>
    %98 = arith.maximumf %96, %97 : vector<16x1xf32>
    %99 = vector.extract_strided_slice %1 {offsets = [7, 0], sizes = [1, 128], strides = [1, 1]} : vector<8x128xf32> to vector<1x128xf32>
    %100 = vector.broadcast %98 : vector<16x1xf32> to vector<16x128xf32>
    %101 = vector.broadcast %99 : vector<1x128xf32> to vector<16x128xf32>
    %102 = arith.mulf %100, %101 : vector<16x128xf32>
    %103 = arith.addf %91, %102 : vector<16x128xf32>
    %cst_20 = arith.constant 5.000000e-01 : f32
    %104 = vector.broadcast %cst_20 : f32 to vector<16x128xf32>
    %105 = arith.mulf %104, %103 : vector<16x128xf32>
    %106 = math.tanh %105 : vector<16x128xf32>
    %cst_21 = arith.constant 5.000000e-01 : f32
    %107 = vector.broadcast %cst_21 : f32 to vector<16x128xf32>
    %108 = arith.mulf %107, %106 : vector<16x128xf32>
    %cst_22 = arith.constant 5.000000e-01 : f32
    %109 = vector.broadcast %cst_22 : f32 to vector<16x128xf32>
    %110 = arith.addf %108, %109 : vector<16x128xf32>
    %111 = arith.truncf %110 : vector<16x128xf32> to vector<16x128xbf16>
    %112 = arith.index_cast %5 : i32 to index
    %c0_23 = arith.constant 0 : index
    %113 = vector.load %arg4[%112, %c0_23] : memref<16x128xbf16, #tpu.memory_space<vmem>>, vector<16x128xbf16>
    tpu.vector_store %arg4[%112, %c0_23], %111 {strides = array<i32>} : memref<16x128xbf16, #tpu.memory_space<vmem>>, vector<16x128xbf16>,
    %c1_i32_24 = arith.constant 1 : i32
    return
  }
  func.func @transform_0(%arg0: i32) -> (i32, i32) {
    %c0_i32 = arith.constant 0 : i32
    %c0_i32_0 = arith.constant 0 : i32
    return %arg0, %c0_i32 : i32, i32
  }
  func.func @transform_1(%arg0: i32) -> (i32, i32) {
    %c0_i32 = arith.constant 0 : i32
    %c0_i32_0 = arith.constant 0 : i32
    %c0_i32_1 = arith.constant 0 : i32
    return %c0_i32, %c0_i32_0 : i32, i32
  }
  func.func @transform_2(%arg0: i32) -> (i32, i32) {
    %c0_i32 = arith.constant 0 : i32
    %c0_i32_0 = arith.constant 0 : i32
    %c0_i32_1 = arith.constant 0 : i32
    return %c0_i32, %c0_i32_0 : i32, i32
  }
  func.func @transform_3(%arg0: i32) -> (i32, i32) {
    %c0_i32 = arith.constant 0 : i32
    %c0_i32_0 = arith.constant 0 : i32
    return %arg0, %c0_i32 : i32, i32
  }
}

</mosaic_0001>

<llo_original>
// kernel: tpu_custom_call.1
$region0: #{tpu_custom_call.1}
  #allocation0 [shape = 'u32[]', space=smem, size = 0x4, offset = 0x4, fixed_abs, tag = 'smem constant byte address 0x4 - core index']
  #allocation1 [shape = 'u32[144,128]{1,0:T(1,128)}', space=vmem, size = 0x12000, scoped, tag = 'internal scratch']
  %s0 = inlined_call_operand.hbm [shape: bf16[16,128], index: 0, kind: input, shape index: {}]
  %s1 = inlined_call_operand.hbm [shape: f32[8,128], index: 1, kind: input, shape index: {}]
  %s2 = inlined_call_operand.hbm [shape: f32[8,128], index: 2, kind: input, shape index: {}]
  %s3 = inlined_call_operand.hbm [shape: bf16[16,128], index: 3, kind: output, shape index: {}]
  %s4 = sld [smem:[#allocation0]]
  $region34: #{tpu_custom_call.1} parent=0
    _
  %s6 = ssub.s32 1, %s4
  %s7 = scalar_select 0, %s6, %s4
  $region1: #{tpu_custom_call.1} parent=0
    #allocation2 [shape = 'u8[4096]{0}', space=vmem, size = 0x1000, scoped, tag = 'input window, operand 0, single buffered']
    #allocation3 [shape = 's32[1]{0}', space=sflag, size = 0x4, scoped, tag = 'scoped memory for tpu_custom_call.1']
    #allocation4 [shape = 's32[1]{0}', space=sflag, size = 0x4, scoped, tag = 'scoped memory for tpu_custom_call.1']
    #allocation5 [shape = 'u8[4096]{0}', space=vmem, size = 0x1000, scoped, tag = 'input window, operand 1, single buffered']
    #allocation6 [shape = 's32[1]{0}', space=sflag, size = 0x4, scoped, tag = 'scoped memory for tpu_custom_call.1']
    #allocation7 [shape = 'u8[4096]{0}', space=vmem, size = 0x1000, scoped, tag = 'input window, operand 2, single buffered']
    #allocation8 [shape = 'u8[4096]{0}', space=vmem, size = 0x1000, scoped, tag = 'output window, operand 0, single buffered']
    %8 = vsyncpa [#allocation3], 0
    %9 = vsyncpa [#allocation6], 0
    %10 = vsyncpa [#allocation4], 0
    // Predicated region
    $region2: #{tpu_custom_call.1} parent=1 // pred_check
      _
    $region3: #{tpu_custom_call.1} parent=1 // pred_check_branch
      %12 = sbr.rel (0) target = $region5
    $region4: #{tpu_custom_call.1} parent=1 // pred_region
      %s14 = ssub.s32 128, 128
      %15 = vsyncadd [#allocation3], %s14
      %s16 = sshll.u32 [#allocation2], 4
      %s17 = int_to_ptr.vmem [resolvable:$true] %s16
      %22 = dma.hbm_to_vmem [thread:$0]  %s0, 128, %s17, [#allocation3], 64, 64, 4
    $region5: #{tpu_custom_call.1} parent=1 // pred_fallthru
      _
    // Predicated region
    $region6: #{tpu_custom_call.1} parent=1 // pred_check
      _
    $region7: #{tpu_custom_call.1} parent=1 // pred_check_branch
      %24 = sbr.rel (0) target = $region9
    $region8: #{tpu_custom_call.1} parent=1 // pred_region
      %s26 = ssub.s32 128, 128
      %27 = vsyncadd [#allocation6], %s26
      %s29 = sshll.u32 [#allocation5], 4
      %s30 = int_to_ptr.vmem [resolvable:$true] %s29
      %32 = dma.hbm_to_vmem [thread:$0]  %s1, 128, %s30, [#allocation6]
    $region9: #{tpu_custom_call.1} parent=1 // pred_fallthru
      _
    // Predicated region
    $region10: #{tpu_custom_call.1} parent=1 // pred_check
      _
    $region11: #{tpu_custom_call.1} parent=1 // pred_check_branch
      %34 = sbr.rel (0) target = $region13
    $region12: #{tpu_custom_call.1} parent=1 // pred_region
      %s36 = ssub.s32 128, 128
      %37 = vsyncadd [#allocation6], %s36
      %s39 = sshll.u32 [#allocation7], 4
      %s40 = int_to_ptr.vmem [resolvable:$true] %s39
      %42 = dma.hbm_to_vmem [thread:$0]  %s2, 128, %s40, [#allocation6]
    $region13: #{tpu_custom_call.1} parent=1 // pred_fallthru
      _
    // Predicated region
    $region14: #{tpu_custom_call.1} parent=1 // pred_check
      _
    $region15: #{tpu_custom_call.1} parent=1 // pred_check_branch
      %44 = sbr.rel (0) target = $region17
    $region16: #{tpu_custom_call.1} parent=1 // pred_region
      %45 = dma.done [#allocation3], 128
    $region17: #{tpu_custom_call.1} parent=1 // pred_fallthru
      _
    // Predicated region
    $region18: #{tpu_custom_call.1} parent=1 // pred_check
      _
    $region19: #{tpu_custom_call.1} parent=1 // pred_check_branch
      %47 = sbr.rel (0) target = $region21
    $region20: #{tpu_custom_call.1} parent=1 // pred_region
      %48 = dma.done [#allocation6], 128
    $region21: #{tpu_custom_call.1} parent=1 // pred_fallthru
      _
    // Predicated region
    $region22: #{tpu_custom_call.1} parent=1 // pred_check
      _
    $region23: #{tpu_custom_call.1} parent=1 // pred_check_branch
      %50 = sbr.rel (0) target = $region25
    $region24: #{tpu_custom_call.1} parent=1 // pred_region
      %51 = dma.done [#allocation6], 128
    $region25: #{tpu_custom_call.1} parent=1 // pred_fallthru
      _
    %v52 = vld [vmem:[#allocation5] sm:$0xff]
    %v53 = vld [vmem:[#allocation7] sm:$0xff]
    %v54 = vld [vmem:[#allocation2] sm:$0xf]
    %v55 = vld [vmem:[#allocation2 + $0x4] sm:$0xf]
    %v56 = vunpack.c.l.bf16 %v54
    %v57 = vunpack.c.l.bf16 %v55
    %v58 = vlaneseq
    %v59 = vshrl.u32 %v58, 7
    %v60 = vsub.s32 0, %v59
    %v61 = vrot.slane %v52, %v60
    %v62 = vmul.f32 %v56, %v61
    %v63 = vmul.f32 %v57, %v61
    %64 = vadd.xlane.f32.xlu0 %v62
    %v65 = vpop.xlane.xlu0 %64
    %66 = vadd.xlane.f32.xlu0 %v63
    %v67 = vpop.xlane.xlu0 %66
    %v68 = vmax.f32 %v65, 0.0
    %v69 = vmax.f32 %v67, 0.0
    %v70 = vlaneseq
    %v71 = vshrl.u32 %v70, 7
    %v72 = vsub.s32 0, %v71
    %v73 = vrot.slane %v53, %v72
    %v74 = vmul.f32 %v68, %v73
    %v75 = vmul.f32 %v69, %v73
    %v76 = vlaneseq
    %v77 = vshrl.u32 %v76, 7
    %v78 = vsub.s32 1, %v77
    %v79 = vrot.slane %v52, %v78
    %v80 = vmul.f32 %v56, %v79
    %v81 = vmul.f32 %v57, %v79
    %82 = vadd.xlane.f32.xlu0 %v80
    %v83 = vpop.xlane.xlu0 %82
    %84 = vadd.xlane.f32.xlu0 %v81
    %v85 = vpop.xlane.xlu0 %84
    %v86 = vmax.f32 %v83, 0.0
    %v87 = vmax.f32 %v85, 0.0
    %v88 = vlaneseq
    %v89 = vshrl.u32 %v88, 7
    %v90 = vsub.s32 1, %v89
    %v91 = vrot.slane %v53, %v90
    %v92 = vmul.f32 %v86, %v91
    %v93 = vmul.f32 %v87, %v91
    %v94 = vadd.f32 %v74, %v92
    %v95 = vadd.f32 %v75, %v93
    %v96 = vlaneseq
    %v97 = vshrl.u32 %v96, 7
    %v98 = vsub.s32 2, %v97
    %v99 = vrot.slane %v52, %v98
    %v100 = vmul.f32 %v56, %v99
    %v101 = vmul.f32 %v57, %v99
    %102 = vadd.xlane.f32.xlu0 %v100
    %v103 = vpop.xlane.xlu0 %102
    %104 = vadd.xlane.f32.xlu0 %v101
    %v105 = vpop.xlane.xlu0 %104
    %v106 = vmax.f32 %v103, 0.0
    %v107 = vmax.f32 %v105, 0.0
    %v108 = vlaneseq
    %v109 = vshrl.u32 %v108, 7
    %v110 = vsub.s32 2, %v109
    %v111 = vrot.slane %v53, %v110
    %v112 = vmul.f32 %v106, %v111
    %v113 = vmul.f32 %v107, %v111
    %v114 = vadd.f32 %v94, %v112
    %v115 = vadd.f32 %v95, %v113
    %v116 = vlaneseq
    %v117 = vshrl.u32 %v116, 7
    %v118 = vsub.s32 3, %v117
    %v119 = vrot.slane %v52, %v118
    %v120 = vmul.f32 %v56, %v119
    %v121 = vmul.f32 %v57, %v119
    %122 = vadd.xlane.f32.xlu0 %v120
    %v123 = vpop.xlane.xlu0 %122
    %124 = vadd.xlane.f32.xlu0 %v121
    %v125 = vpop.xlane.xlu0 %124
    %v126 = vmax.f32 %v123, 0.0
    %v127 = vmax.f32 %v125, 0.0
    %v128 = vlaneseq
    %v129 = vshrl.u32 %v128, 7
    %v130 = vsub.s32 3, %v129
    %v131 = vrot.slane %v53, %v130
    %v132 = vmul.f32 %v126, %v131
    %v133 = vmul.f32 %v127, %v131
    %v134 = vadd.f32 %v114, %v132
    %v135 = vadd.f32 %v115, %v133
    %v136 = vlaneseq
    %v137 = vshrl.u32 %v136, 7
    %v138 = vsub.s32 4, %v137
    %v139 = vrot.slane %v52, %v138
    %v140 = vmul.f32 %v56, %v139
    %v141 = vmul.f32 %v57, %v139
    %142 = vadd.xlane.f32.xlu0 %v140
    %v143 = vpop.xlane.xlu0 %142
    %144 = vadd.xlane.f32.xlu0 %v141
    %v145 = vpop.xlane.xlu0 %144
    %v146 = vmax.f32 %v143, 0.0
    %v147 = vmax.f32 %v145, 0.0
    %v148 = vlaneseq
    %v149 = vshrl.u32 %v148, 7
    %v150 = vsub.s32 4, %v149
    %v151 = vrot.slane %v53, %v150
    %v152 = vmul.f32 %v146, %v151
    %v153 = vmul.f32 %v147, %v151
    %v154 = vadd.f32 %v134, %v152
    %v155 = vadd.f32 %v135, %v153
    %v156 = vlaneseq
    %v157 = vshrl.u32 %v156, 7
    %v158 = vsub.s32 5, %v157
    %v159 = vrot.slane %v52, %v158
    %v160 = vmul.f32 %v56, %v159
    %v161 = vmul.f32 %v57, %v159
    %162 = vadd.xlane.f32.xlu0 %v160
    %v163 = vpop.xlane.xlu0 %162
    %164 = vadd.xlane.f32.xlu0 %v161
    %v165 = vpop.xlane.xlu0 %164
    %v166 = vmax.f32 %v163, 0.0
    %v167 = vmax.f32 %v165, 0.0
    %v168 = vlaneseq
    %v169 = vshrl.u32 %v168, 7
    %v170 = vsub.s32 5, %v169
    %v171 = vrot.slane %v53, %v170
    %v172 = vmul.f32 %v166, %v171
    %v173 = vmul.f32 %v167, %v171
    %v174 = vadd.f32 %v154, %v172
    %v175 = vadd.f32 %v155, %v173
    %v176 = vlaneseq
    %v177 = vshrl.u32 %v176, 7
    %v178 = vsub.s32 6, %v177
    %v179 = vrot.slane %v52, %v178
    %v180 = vmul.f32 %v56, %v179
    %v181 = vmul.f32 %v57, %v179
    %182 = vadd.xlane.f32.xlu0 %v180
    %v183 = vpop.xlane.xlu0 %182
    %184 = vadd.xlane.f32.xlu0 %v181
    %v185 = vpop.xlane.xlu0 %184
    %v186 = vmax.f32 %v183, 0.0
    %v187 = vmax.f32 %v185, 0.0
    %v188 = vlaneseq
    %v189 = vshrl.u32 %v188, 7
    %v190 = vsub.s32 6, %v189
    %v191 = vrot.slane %v53, %v190
    %v192 = vmul.f32 %v186, %v191
    %v193 = vmul.f32 %v187, %v191
    %v194 = vadd.f32 %v174, %v192
    %v195 = vadd.f32 %v175, %v193
    %v196 = vlaneseq
    %v197 = vshrl.u32 %v196, 7
    %v198 = vsub.s32 7, %v197
    %v199 = vrot.slane %v52, %v198
    %v200 = vmul.f32 %v56, %v199
    %v201 = vmul.f32 %v57, %v199
    %202 = vadd.xlane.f32.xlu0 %v200
    %v203 = vpop.xlane.xlu0 %202
    %204 = vadd.xlane.f32.xlu0 %v201
    %v205 = vpop.xlane.xlu0 %204
    %v206 = vmax.f32 %v203, 0.0
    %v207 = vmax.f32 %v205, 0.0
    %v208 = vlaneseq
    %v209 = vshrl.u32 %v208, 7
    %v210 = vsub.s32 7, %v209
    %v211 = vrot.slane %v53, %v210
    %v212 = vmul.f32 %v206, %v211
    %v213 = vmul.f32 %v207, %v211
    %v214 = vadd.f32 %v194, %v212
    %v215 = vadd.f32 %v195, %v213
    %v216 = vmul.f32 %v214, 0.5
    %v217 = vmul.f32 %v215, 0.5
    %v218 = vtanh.pop %v216
    %v219 = vtanh.pop %v217
    %v220 = vmul.f32 %v218, 0.5
    %v221 = vmul.f32 %v219, 0.5
    %v222 = vadd.f32 %v220, 0.5
    %v223 = vadd.f32 %v221, 0.5
    %v224 = vpack.c.bf16 %v223, %v222
    %v226 = vunpack.c.l.b16 %v224
    %v227 = vunpack.c.h.b16 %v224
    %v228 = vpack.c.b16 %v226, %v226
    %v229 = vpack.c.b16 %v227, %v227
    %232 = vst [vmem:[#allocation8] sm:$0xf] %v228
    %233 = vst [vmem:[#allocation8 + $0x4] sm:$0xf] %v229
    // Predicated region
    $region26: #{tpu_custom_call.1} parent=1 // pred_check
      _
    $region27: #{tpu_custom_call.1} parent=1 // pred_check_branch
      %235 = sbr.rel (0) target = $region29
    $region28: #{tpu_custom_call.1} parent=1 // pred_region
      %s237 = ssub.s32 128, 128
      %238 = vsyncadd [#allocation4], %s237
      %s239 = sshll.u32 [#allocation8], 4
      %s240 = int_to_ptr.vmem [resolvable:$true] %s239
      %245 = dma.vmem_to_hbm [thread:$0]  %s240, 128, %s3, [#allocation4], 64, 64, 4
    $region29: #{tpu_custom_call.1} parent=1 // pred_fallthru
      _
    // Predicated region
    $region30: #{tpu_custom_call.1} parent=1 // pred_check
      _
    $region31: #{tpu_custom_call.1} parent=1 // pred_check_branch
      %247 = sbr.rel (0) target = $region33
    $region32: #{tpu_custom_call.1} parent=1 // pred_region
      %248 = dma.done [#allocation4], 128
    $region33: #{tpu_custom_call.1} parent=1 // pred_fallthru
      _
    %249 = vsyncpa [#allocation3], 1
    %250 = vsyncpa [#allocation6], 1
    %251 = vsyncpa [#allocation4], 1

</llo_original>
